<compile_context>
chip_gen: v7x
topology: tpu7x:2x2x1
jax: 0.10.0
libtpu: 0.0.40
codegen_flags: <defaults>
</compile_context>

<pallas_src>
import jax
import jax.numpy as jnp
from jax import lax
from jax.experimental import pallas as pl
from jax.experimental.pallas import tpu as pltpu

H1, H2, H3, H4 = 256, 128, 16, 1
H3_PAD = 128          # pad the 16-wide hidden layer up to one full lane tile
BN_EPS = 1e-5


# ----------------------------- Pallas kernel ---------------------------------
def netlocald_kernel(x_ref,
                     w1_ref, b1_ref,
                     w2_ref, b2_ref,
                     w3_ref, b3_ref,
                     w4_ref, b4_ref,
                     out_ref):
    cdt = x_ref.dtype                                   # bf16 (default) or f32
    x = x_ref[...]                                      # (tb, Cin)

    # fc1 (+folded BN) + ReLU   -- MXU, f32 accumulation
    h = jnp.dot(x, w1_ref[...], preferred_element_type=jnp.float32)
    h = jnp.maximum(h + b1_ref[...], 0.0).astype(cdt)   # (tb, 256)

    # fc2 (+folded BN) + ReLU
    h = jnp.dot(h, w2_ref[...], preferred_element_type=jnp.float32)
    h = jnp.maximum(h + b2_ref[...], 0.0).astype(cdt)   # (tb, 128)

    # fc3 (+folded BN) + ReLU  (padded 16 -> 128 lanes; padded lanes stay 0)
    h = jnp.dot(h, w3_ref[...], preferred_element_type=jnp.float32)
    h = jnp.maximum(h + b3_ref[...], 0.0)                # (tb, 128) f32

    # fc4 (N=1): VPU broadcast-multiply + XLU lane reduce instead of an MXU
    # pass that would cost as much as the whole 128-wide layer above.
    y = jnp.sum(h * w4_ref[...], axis=-1, keepdims=True) + b4_ref[...]
    out_ref[...] = y.astype(out_ref.dtype)               # (tb, 1)


# ------------------------------- wrapper --------------------------------------
def _fold_bn(w, b, gamma, beta, mean, var, eps=BN_EPS):
    """Fold eval-mode BatchNorm1d into the preceding Linear (y = x @ w + b)."""
    scale = gamma * lax.rsqrt(var + eps)                 # (out,)
    w_f = w * scale[None, :]
    b_f = (b - mean) * scale + beta
    return w_f, b_f


def _round_up(n, m):
    return ((n + m - 1) // m) * m


def netlocald_forward(x, params, *, block_b=512, compute_dtype=jnp.bfloat16):
    """x: (B, in_channel) -> (B, 1) float32."""
    x = jnp.asarray(x)
    B, Cin = x.shape
    cdt = jnp.dtype(compute_dtype)

    # ---- fold BN into fc1..fc3 in f32, then cast operands for the MXU -------
    f32 = jnp.float32
    w1, b1 = _fold_bn(params["w1"].astype(f32), params["b1"].astype(f32),
                      params["g1"], params["beta1"], params["m1"], params["v1"])
    w2, b2 = _fold_bn(params["w2"].astype(f32), params["b2"].astype(f32),
                      params["g2"], params["beta2"], params["m2"], params["v2"])
    w3, b3 = _fold_bn(params["w3"].astype(f32), params["b3"].astype(f32),
                      params["g3"], params["beta3"], params["m3"], params["v3"])
    w4 = params["w4"].astype(f32)                        # (16, 1)
    b4 = params["b4"].astype(f32)                        # (1,)

    # Zero-pad the 16-wide layer to 128 lanes (padded cols are 0 after ReLU and
    # hit zero entries of the fc4 row, so the output is unchanged).
    w3p = jnp.zeros((H2, H3_PAD), f32).at[:, :H3].set(w3)
    b3p = jnp.zeros((H3_PAD,), f32).at[:H3].set(b3)
    w4row = jnp.zeros((1, H3_PAD), f32).at[0, :H3].set(w4[:, 0])

    xc = x.astype(cdt)
    w1c, w2c, w3c = w1.astype(cdt), w2.astype(cdt), w3p.astype(cdt)
    b1r = b1.reshape(1, H1)
    b2r = b2.reshape(1, H2)
    b3r = b3p.reshape(1, H3_PAD)
    b4r = b4.reshape(1, 1)

    # ---- batch tiling --------------------------------------------------------
    if B <= 128:
        tb = _round_up(B, 16)                 # single, sublane-aligned tile
    else:
        # Large tiles amortize per-grid-step overhead and fill MXU M streaming,
        # but keep >= ~4 grid steps so v7x's two TensorCores both get work.
        tb = min(_round_up(block_b, 128), max(128, _round_up(pl.cdiv(B, 4), 128)))
    Bp = _round_up(B, tb)
    if Bp != B:
        xc = jnp.pad(xc, ((0, Bp - B), (0, 0)))
    grid = Bp // tb

    # ---- explicit VMEM budget (double-buffered x/out + resident weights) ----
    bpe = cdt.itemsize
    est = (2 * tb * Cin * bpe                                    # x tile (x2 bufs)
           + 2 * tb * H4 * 4                                     # out tile (x2)
           + 2 * (Cin * H1 + H1 * H2 + H2 * H3_PAD) * bpe        # weights (x2)
           + 2 * (H1 + H2 + 2 * H3_PAD + 1) * 4                  # biases + fc4 row
           + 2 * tb * (H1 + H2 + H3_PAD) * 4)                    # live activations
    vmem_limit = int(min(max(est + (4 << 20), 32 << 20), 64 << 20))

    x_spec = pl.BlockSpec((tb, Cin), lambda i: (i, 0))
    out_spec = pl.BlockSpec((tb, H4), lambda i: (i, 0))

    def const_spec(shape):
        # Grid-invariant operand: fetched once, stays VMEM-resident.
        return pl.BlockSpec(shape, lambda i: (0, 0))

    out = pl.pallas_call(
        netlocald_kernel,
        out_shape=jax.ShapeDtypeStruct((Bp, H4), jnp.float32),
        grid_spec=pltpu.PrefetchScalarGridSpec(
            num_scalar_prefetch=0,
            grid=(grid,),
            in_specs=[x_spec,
                      const_spec((Cin, H1)), const_spec((1, H1)),
                      const_spec((H1, H2)), const_spec((1, H2)),
                      const_spec((H2, H3_PAD)), const_spec((1, H3_PAD)),
                      const_spec((1, H3_PAD)), const_spec((1, 1))],
            out_specs=out_spec,
        ),
        compiler_params=pltpu.CompilerParams(
            dimension_semantics=("parallel",),
            vmem_limit_bytes=vmem_limit),
    )(xc, w1c, b1r, w2c, b2r, w3c, b3r, w4row, b4r)

    return out[:B]


# ---------------- pure-JAX reference (mirrors torch forward, eval-mode BN) ----
def netlocald_ref(x, params):
    def bn(h, g, be, m, v):
        return g * (h - m) * lax.rsqrt(v + BN_EPS) + be

    h = jax.nn.relu(bn(x @ params["w1"] + params["b1"],
                       params["g1"], params["beta1"], params["m1"], params["v1"]))
    h = jax.nn.relu(bn(h @ params["w2"] + params["b2"],
                       params["g2"], params["beta2"], params["m2"], params["v2"]))
    h = jax.nn.relu(bn(h @ params["w3"] + params["b3"],
                       params["g3"], params["beta3"], params["m3"], params["v3"]))
    return h @ params["w4"] + params["b4"]


# --------------------------------- demo ---------------------------------------
if __name__ == "__main__":
    B, Cin = 200, 64                 # small demo; exercises 2 batch tiles + padding
    key = jax.random.PRNGKey(0)
    kx, kp = jax.random.split(key)
    x = jax.random.normal(kx, (B, Cin), jnp.float32)

    # Deterministic params. Linear weights stored as (in, out) == torch weight.T,
    # torch-default uniform(-1/sqrt(fan_in), 1/sqrt(fan_in)); BN has non-trivial
    # gamma/beta/running stats so the fold is actually tested.
    dims = [(Cin, H1), (H1, H2), (H2, H3), (H3, H4)]
    params = {}
    keys = jax.random.split(kp, 4 * 2 + 3 * 4)
    ki = 0
    for li, (din, dout) in enumerate(dims, start=1):
        bound = 1.0 / (din ** 0.5)
        params[f"w{li}"] = jax.random.uniform(keys[ki], (din, dout),
                                              jnp.float32, -bound, bound); ki += 1
        params[f"b{li}"] = jax.random.uniform(keys[ki], (dout,),
                                              jnp.float32, -bound, bound); ki += 1
    for li, dout in zip((1, 2, 3), (H1, H2, H3)):
        params[f"g{li}"] = jax.random.uniform(keys[ki], (dout,),
                                              jnp.float32, 0.5, 1.5); ki += 1
        params[f"beta{li}"] = 0.1 * jax.random.normal(keys[ki], (dout,),
                                                      jnp.float32); ki += 1
        params[f"m{li}"] = 0.1 * jax.random.normal(keys[ki], (dout,),
                                                   jnp.float32); ki += 1
        params[f"v{li}"] = jax.random.uniform(keys[ki], (dout,),
                                              jnp.float32, 0.5, 1.5); ki += 1

    ref = netlocald_ref(x, params)

    # Exact f32 path (multi-tile: grid=2, tb=128, incl. batch padding).
    out_f32 = jax.block_until_ready(
        netlocald_forward(x, params, compute_dtype=jnp.float32))
    assert out_f32.shape == (B, 1), out_f32.shape
    assert jnp.allclose(out_f32, ref, rtol=2e-3, atol=2e-3), \
        float(jnp.max(jnp.abs(out_f32 - ref)))

    # Default bf16 MXU path (f32 accumulation) against the f32 reference.
    out_bf16 = jax.block_until_ready(netlocald_forward(x, params))
    assert out_bf16.shape == (B, 1), out_bf16.shape
    assert jnp.allclose(out_bf16, ref, rtol=5e-2, atol=5e-2), \
        float(jnp.max(jnp.abs(out_bf16 - ref)))

    # Tiny-batch single-tile path (tb rounded up to a sublane multiple).
    out_small = jax.block_until_ready(
        netlocald_forward(x[:6], params, compute_dtype=jnp.float32))
    assert jnp.allclose(out_small, ref[:6], rtol=2e-3, atol=2e-3), \
        float(jnp.max(jnp.abs(out_small - ref[:6])))

    print("KERNEL_OK")
</pallas_src>

<mosaic_0001>
module attributes {stable_mosaic.version = 11 : i64} {
  func.func @netlocald_kernel(%arg0: i32, %arg1: memref<128x64xf32, #tpu.memory_space<vmem>>, %arg2: memref<64x256xf32, #tpu.memory_space<vmem>>, %arg3: memref<1x256xf32, #tpu.memory_space<vmem>>, %arg4: memref<256x128xf32, #tpu.memory_space<vmem>>, %arg5: memref<1x128xf32, #tpu.memory_space<vmem>>, %arg6: memref<128x128xf32, #tpu.memory_space<vmem>>, %arg7: memref<1x128xf32, #tpu.memory_space<vmem>>, %arg8: memref<1x128xf32, #tpu.memory_space<vmem>>, %arg9: memref<1x1xf32, #tpu.memory_space<vmem>>, %arg10: memref<128x1xf32, #tpu.memory_space<vmem>>) attributes {dimension_semantics = [#tpu.dimension_semantics<parallel>], iteration_bounds = array<i64: 2>, scalar_prefetch = 0 : i64, scratch_operands = 0 : i64, tpu.core_type = #tpu.core_type<tc>, window_params = [{transform_indices = @transform_0, window_bounds = array<i64: 128, 64>}, {pipeline_mode = #tpu.pipeline_mode<synchronous>, transform_indices = @transform_1, window_bounds = array<i64: 64, 256>}, {pipeline_mode = #tpu.pipeline_mode<synchronous>, transform_indices = @transform_2, window_bounds = array<i64: 1, 256>}, {pipeline_mode = #tpu.pipeline_mode<synchronous>, transform_indices = @transform_3, window_bounds = array<i64: 256, 128>}, {pipeline_mode = #tpu.pipeline_mode<synchronous>, transform_indices = @transform_4, window_bounds = array<i64: 1, 128>}, {pipeline_mode = #tpu.pipeline_mode<synchronous>, transform_indices = @transform_5, window_bounds = array<i64: 128, 128>}, {pipeline_mode = #tpu.pipeline_mode<synchronous>, transform_indices = @transform_6, window_bounds = array<i64: 1, 128>}, {pipeline_mode = #tpu.pipeline_mode<synchronous>, transform_indices = @transform_7, window_bounds = array<i64: 1, 128>}, {pipeline_mode = #tpu.pipeline_mode<synchronous>, transform_indices = @transform_8, window_bounds = array<i64: 1, 1>}, {transform_indices = @transform_9, window_bounds = array<i64: 128, 1>}]} {
    %c0 = arith.constant 0 : index
    %c0_0 = arith.constant 0 : index
    %0 = vector.load %arg1[%c0, %c0_0] : memref<128x64xf32, #tpu.memory_space<vmem>>, vector<128x64xf32>
    %c0_1 = arith.constant 0 : index
    %c0_2 = arith.constant 0 : index
    %1 = vector.load %arg2[%c0_1, %c0_2] : memref<64x256xf32, #tpu.memory_space<vmem>>, vector<64x256xf32>
    %cst = arith.constant dense<0.000000e+00> : vector<128x256xf32>
    %2 = tpu.matmul %0, %1, %cst {dimension_numbers = #tpu.dot_dimension_numbers<[1], [0], [0], [1], [0, 0, 1, 1], [], []>} : vector<128x64xf32>, vector<64x256xf32>, vector<128x256xf32> -> vector<128x256xf32>
    %c0_3 = arith.constant 0 : index
    %c0_4 = arith.constant 0 : index
    %3 = vector.load %arg3[%c0_3, %c0_4] : memref<1x256xf32, #tpu.memory_space<vmem>>, vector<1x256xf32>
    %4 = vector.broadcast %3 : vector<1x256xf32> to vector<128x256xf32>
    %5 = arith.addf %2, %4 : vector<128x256xf32>
    %cst_5 = arith.constant 0.000000e+00 : f32
    %6 = vector.broadcast %cst_5 : f32 to vector<128x256xf32>
    %7 = arith.maximumf %5, %6 : vector<128x256xf32>
    %c0_6 = arith.constant 0 : index
    %c0_7 = arith.constant 0 : index
    %8 = vector.load %arg4[%c0_6, %c0_7] : memref<256x128xf32, #tpu.memory_space<vmem>>, vector<256x128xf32>
    %cst_8 = arith.constant dense<0.000000e+00> : vector<128x128xf32>
    %9 = tpu.matmul %7, %8, %cst_8 {dimension_numbers = #tpu.dot_dimension_numbers<[1], [0], [0], [1], [0, 0, 1, 1], [], []>} : vector<128x256xf32>, vector<256x128xf32>, vector<128x128xf32> -> vector<128x128xf32>
    %c0_9 = arith.constant 0 : index
    %c0_10 = arith.constant 0 : index
    %10 = vector.load %arg5[%c0_9, %c0_10] : memref<1x128xf32, #tpu.memory_space<vmem>>, vector<1x128xf32>
    %11 = vector.broadcast %10 : vector<1x128xf32> to vector<128x128xf32>
    %12 = arith.addf %9, %11 : vector<128x128xf32>
    %cst_11 = arith.constant 0.000000e+00 : f32
    %13 = vector.broadcast %cst_11 : f32 to vector<128x128xf32>
    %14 = arith.maximumf %12, %13 : vector<128x128xf32>
    %c0_12 = arith.constant 0 : index
    %c0_13 = arith.constant 0 : index
    %15 = vector.load %arg6[%c0_12, %c0_13] : memref<128x128xf32, #tpu.memory_space<vmem>>, vector<128x128xf32>
    %cst_14 = arith.constant dense<0.000000e+00> : vector<128x128xf32>
    %16 = tpu.matmul %14, %15, %cst_14 {dimension_numbers = #tpu.dot_dimension_numbers<[1], [0], [0], [1], [0, 0, 1, 1], [], []>} : vector<128x128xf32>, vector<128x128xf32>, vector<128x128xf32> -> vector<128x128xf32>
    %c0_15 = arith.constant 0 : index
    %c0_16 = arith.constant 0 : index
    %17 = vector.load %arg7[%c0_15, %c0_16] : memref<1x128xf32, #tpu.memory_space<vmem>>, vector<1x128xf32>
    %18 = vector.broadcast %17 : vector<1x128xf32> to vector<128x128xf32>
    %19 = arith.addf %16, %18 : vector<128x128xf32>
    %cst_17 = arith.constant 0.000000e+00 : f32
    %20 = vector.broadcast %cst_17 : f32 to vector<128x128xf32>
    %21 = arith.maximumf %19, %20 : vector<128x128xf32>
    %c0_18 = arith.constant 0 : index
    %c0_19 = arith.constant 0 : index
    %22 = vector.load %arg8[%c0_18, %c0_19] : memref<1x128xf32, #tpu.memory_space<vmem>>, vector<1x128xf32>
    %23 = vector.broadcast %22 : vector<1x128xf32> to vector<128x128xf32>
    %24 = arith.mulf %21, %23 : vector<128x128xf32>
    %cst_20 = arith.constant dense<0.000000e+00> : vector<128xf32>
    %25 = vector.multi_reduction <add>, %24, %cst_20 [1] : vector<128x128xf32> to vector<128xf32>
    %26 = vector.shape_cast %25 : vector<128xf32> to vector<128x1xf32>
    %c0_21 = arith.constant 0 : index
    %c0_22 = arith.constant 0 : index
    %27 = vector.load %arg9[%c0_21, %c0_22] : memref<1x1xf32, #tpu.memory_space<vmem>>, vector<1x1xf32>
    %28 = vector.broadcast %27 : vector<1x1xf32> to vector<128x1xf32>
    %29 = arith.addf %26, %28 : vector<128x1xf32>
    %c0_23 = arith.constant 0 : index
    %c0_24 = arith.constant 0 : index
    %30 = vector.load %arg10[%c0_23, %c0_24] : memref<128x1xf32, #tpu.memory_space<vmem>>, vector<128x1xf32>
    tpu.vector_store %arg10[%c0_23, %c0_24], %29 {strides = array<i32>} : memref<128x1xf32, #tpu.memory_space<vmem>>, vector<128x1xf32>,
    return
  }
  func.func @transform_0(%arg0: i32) -> (i32, i32) {
    %c0_i32 = arith.constant 0 : i32
    %c0_i32_0 = arith.constant 0 : i32
    return %arg0, %c0_i32 : i32, i32
  }
  func.func @transform_1(%arg0: i32) -> (i32, i32) {
    %c0_i32 = arith.constant 0 : i32
    %c0_i32_0 = arith.constant 0 : i32
    %c0_i32_1 = arith.constant 0 : i32
    return %c0_i32, %c0_i32_0 : i32, i32
  }
  func.func @transform_2(%arg0: i32) -> (i32, i32) {
    %c0_i32 = arith.constant 0 : i32
    %c0_i32_0 = arith.constant 0 : i32
    %c0_i32_1 = arith.constant 0 : i32
    return %c0_i32, %c0_i32_0 : i32, i32
  }
  func.func @transform_3(%arg0: i32) -> (i32, i32) {
    %c0_i32 = arith.constant 0 : i32
    %c0_i32_0 = arith.constant 0 : i32
    %c0_i32_1 = arith.constant 0 : i32
    return %c0_i32, %c0_i32_0 : i32, i32
  }
  func.func @transform_4(%arg0: i32) -> (i32, i32) {
    %c0_i32 = arith.constant 0 : i32
    %c0_i32_0 = arith.constant 0 : i32
    %c0_i32_1 = arith.constant 0 : i32
    return %c0_i32, %c0_i32_0 : i32, i32
  }
  func.func @transform_5(%arg0: i32) -> (i32, i32) {
    %c0_i32 = arith.constant 0 : i32
    %c0_i32_0 = arith.constant 0 : i32
    %c0_i32_1 = arith.constant 0 : i32
    return %c0_i32, %c0_i32_0 : i32, i32
  }
  func.func @transform_6(%arg0: i32) -> (i32, i32) {
    %c0_i32 = arith.constant 0 : i32
    %c0_i32_0 = arith.constant 0 : i32
    %c0_i32_1 = arith.constant 0 : i32
    return %c0_i32, %c0_i32_0 : i32, i32
  }
  func.func @transform_7(%arg0: i32) -> (i32, i32) {
    %c0_i32 = arith.constant 0 : i32
    %c0_i32_0 = arith.constant 0 : i32
    %c0_i32_1 = arith.constant 0 : i32
    return %c0_i32, %c0_i32_0 : i32, i32
  }
  func.func @transform_8(%arg0: i32) -> (i32, i32) {
    %c0_i32 = arith.constant 0 : i32
    %c0_i32_0 = arith.constant 0 : i32
    %c0_i32_1 = arith.constant 0 : i32
    return %c0_i32, %c0_i32_0 : i32, i32
  }
  func.func @transform_9(%arg0: i32) -> (i32, i32) {
    %c0_i32 = arith.constant 0 : i32
    %c0_i32_0 = arith.constant 0 : i32
    return %arg0, %c0_i32 : i32, i32
  }
}

</mosaic_0001>

<llo_original>
// kernel: tpu_custom_call.1
$region0: #{tpu_custom_call.1}
  #allocation0 [shape = 'u32[]', space=smem, size = 0x4, offset = 0x4, fixed_abs, tag = 'smem constant byte address 0x4 - core index']
  #allocation1 [shape = 'u32[144,128]{1,0:T(1,128)}', space=vmem, size = 0x12000, scoped, tag = 'internal scratch']
  #allocation2 [shape = 'f32[1,1]{1,0:T(1,128)S(1)}', space=vmem, size = 0x200, scoped, tag = 'scoped memory for tpu_custom_call.1']
  %s0 = inlined_call_operand.vmem [shape: f32[256,64], index: 0, kind: input, shape index: {}]
  %s1 = inlined_call_operand.vmem [shape: f32[64,256], index: 1, kind: input, shape index: {}]
  %s2 = inlined_call_operand.vmem [shape: f32[1,256], index: 2, kind: input, shape index: {}]
  %s3 = inlined_call_operand.vmem [shape: f32[256,128], index: 3, kind: input, shape index: {}]
  %s4 = inlined_call_operand.vmem [shape: f32[1,128], index: 4, kind: input, shape index: {}]
  %s5 = inlined_call_operand.hbm [shape: f32[128,128], index: 5, kind: input, shape index: {}]
  %s6 = inlined_call_operand.vmem [shape: f32[1,128], index: 6, kind: input, shape index: {}]
  %s7 = inlined_call_operand.vmem [shape: f32[1,128], index: 7, kind: input, shape index: {}]
  %s8 = inlined_call_operand.<no memory space> [shape: f32[1,1], index: 8, kind: input, shape index: {}]
  %s9 = inlined_call_operand.vmem [shape: f32[256,1], index: 9, kind: output, shape index: {}]
  %s10 = sld [smem:[#allocation0]]
  $region73: #{tpu_custom_call.1} parent=0
    _
  %s12 = ssub.s32 1, %s10
  %s13 = scalar_select 0, %s12, %s10
  %v14 = vstv %s8
  %15 = vst [vmem:[#allocation2] sm:$0x1] %v14
  $region1: #{tpu_custom_call.1} parent=0
    #allocation3 [shape = 'u8[65536]{0}', space=vmem, size = 0x10000, scoped, tag = 'input window, operand 5, single buffered']
    #allocation4 [shape = 's32[2]{0}', space=sflag, size = 0x8, scoped, tag = 'scoped memory for tpu_custom_call.1']
    %16 = vsyncpa [#allocation4], 0
    loop: start=0, step=1, limit=4
    $region2: #{tpu_custom_call.1} parent=1 // loop_pre_header
      _
    $region3: #{tpu_custom_call.1} parent=1 // loop_header
      %s18 = sphi 0, %s22
      %p19 = scmp.ge.s32.totalorder %s18, 4
      %s28 = sphi 0, %s30
      %s31 = sphi 0, %s28
      %s32 = sphi 0, %s31
      %s48 = sphi 0, %s32
      %s52 = sphi 0, %s52
      %s54 = sphi 0, %s52
      %s55 = sphi 0, %s54
      %s69 = sphi 0, %s55
      %s73 = sphi 0, %s73
      %s75 = sphi 0, %s73
      %s76 = sphi 0, %s75
      %s90 = sphi 0, %s76
      %s94 = sphi 0, %s94
      %s96 = sphi 0, %s94
      %s97 = sphi 0, %s96
      %s111 = sphi 0, %s97
      %s115 = sphi 0, %s115
      %s117 = sphi 0, %s115
      %s118 = sphi 0, %s117
      %s132 = sphi 0, %s118
      %s136 = sphi 0, %s136
      %s138 = sphi 0, %s136
      %s139 = sphi 0, %s138
      %s153 = sphi 0, %s139
      %s157 = sphi 0, %s157
      %s159 = sphi 0, %s157
      %s160 = sphi 0, %s159
      %s174 = sphi 0, %s160
      %s178 = sphi 0, %s178
      %s180 = sphi 0, %s178
      %s181 = sphi 0, %s180
      %s195 = sphi 0, %s181
      %s199 = sphi 0, %s199
      %s201 = sphi 0, %s199
      %s202 = sphi 0, %s201
      %s216 = sphi 0, %s202
      %s222 = sphi 0, %s224
      %s225 = sphi 0, %s222
      %s226 = sphi 0, %s225
      %s242 = sphi 0, %s226
    $region4: #{tpu_custom_call.1} parent=1 // loop_header_branch
      %21 = sbr.rel (%p19) target = $region8
    $region5: #{tpu_custom_call.1} parent=1 // loop_body
      %s23 = ssub.s32 %s18, 1
      %s24 = ssub.s32 %s18, 2
      %s25 = sadd.s32 %s18, 1
      %s26 = ssub.s32 %s18, %s25
      %p27 = scmp.eq.s32.totalorder %s26, 0
      %s29 = sadd.s32 %s28, 1
      %s30 = scalar_select %p27, %s28, %s29
      %p33 = pneg %p27
      %p34 = scmp.eq.s32.totalorder %s18, 1
      %p35 = por %p33, %p34
      %p36 = scmp.ne.s32.totalorder %s28, %s31
      %p37 = scmp.eq.s32.totalorder %s18, 0
      %p38 = por %p36, %p37
      %p39 = scmp.ne.s32.totalorder %s28, %s31
      %p40 = scmp.eq.s32.totalorder %s23, 1
      %p41 = por %p39, %p40
      %p42 = scmp.ne.s32.totalorder %s31, %s32
      %p43 = scmp.eq.s32.totalorder %s23, 0
      %p44 = por %p42, %p43
      %p45 = scmp.ne.s32.totalorder %s31, %s32
      %p46 = scmp.eq.s32.totalorder %s24, 1
      %p47 = por %p45, %p46
      %p49 = scmp.ne.s32.totalorder %s32, %s48
      %p50 = scmp.eq.s32.totalorder %s24, 0
      %p51 = por %p49, %p50
      %s53 = sadd.s32 %s52, 1
      %p56 = scmp.eq.s32.totalorder %s18, 1
      %p57 = scmp.ne.s32.totalorder %s52, %s54
      %p58 = scmp.eq.s32.totalorder %s18, 0
      %p59 = por %p57, %p58
      %p60 = scmp.ne.s32.totalorder %s52, %s54
      %p61 = scmp.eq.s32.totalorder %s23, 1
      %p62 = por %p60, %p61
      %p63 = scmp.ne.s32.totalorder %s54, %s55
      %p64 = scmp.eq.s32.totalorder %s23, 0
      %p65 = por %p63, %p64
      %p66 = scmp.ne.s32.totalorder %s54, %s55
      %p67 = scmp.eq.s32.totalorder %s24, 1
      %p68 = por %p66, %p67
      %p70 = scmp.ne.s32.totalorder %s55, %s69
      %p71 = scmp.eq.s32.totalorder %s24, 0
      %p72 = por %p70, %p71
      %s74 = sadd.s32 %s73, 1
      %p77 = scmp.eq.s32.totalorder %s18, 1
      %p78 = scmp.ne.s32.totalorder %s73, %s75
      %p79 = scmp.eq.s32.totalorder %s18, 0
      %p80 = por %p78, %p79
      %p81 = scmp.ne.s32.totalorder %s73, %s75
      %p82 = scmp.eq.s32.totalorder %s23, 1
      %p83 = por %p81, %p82
      %p84 = scmp.ne.s32.totalorder %s75, %s76
      %p85 = scmp.eq.s32.totalorder %s23, 0
      %p86 = por %p84, %p85
      %p87 = scmp.ne.s32.totalorder %s75, %s76
      %p88 = scmp.eq.s32.totalorder %s24, 1
      %p89 = por %p87, %p88
      %p91 = scmp.ne.s32.totalorder %s76, %s90
      %p92 = scmp.eq.s32.totalorder %s24, 0
      %p93 = por %p91, %p92
      %s95 = sadd.s32 %s94, 1
      %p98 = scmp.eq.s32.totalorder %s18, 1
      %p99 = scmp.ne.s32.totalorder %s94, %s96
      %p100 = scmp.eq.s32.totalorder %s18, 0
      %p101 = por %p99, %p100
      %p102 = scmp.ne.s32.totalorder %s94, %s96
      %p103 = scmp.eq.s32.totalorder %s23, 1
      %p104 = por %p102, %p103
      %p105 = scmp.ne.s32.totalorder %s96, %s97
      %p106 = scmp.eq.s32.totalorder %s23, 0
      %p107 = por %p105, %p106
      %p108 = scmp.ne.s32.totalorder %s96, %s97
      %p109 = scmp.eq.s32.totalorder %s24, 1
      %p110 = por %p108, %p109
      %p112 = scmp.ne.s32.totalorder %s97, %s111
      %p113 = scmp.eq.s32.totalorder %s24, 0
      %p114 = por %p112, %p113
      %s116 = sadd.s32 %s115, 1
      %p119 = scmp.eq.s32.totalorder %s18, 1
      %p120 = scmp.ne.s32.totalorder %s115, %s117
      %p121 = scmp.eq.s32.totalorder %s18, 0
      %p122 = por %p120, %p121
      %p123 = scmp.ne.s32.totalorder %s115, %s117
      %p124 = scmp.eq.s32.totalorder %s23, 1
      %p125 = por %p123, %p124
      %p126 = scmp.ne.s32.totalorder %s117, %s118
      %p127 = scmp.eq.s32.totalorder %s23, 0
      %p128 = por %p126, %p127
      %p129 = scmp.ne.s32.totalorder %s117, %s118
      %p130 = scmp.eq.s32.totalorder %s24, 1
      %p131 = por %p129, %p130
      %p133 = scmp.ne.s32.totalorder %s118, %s132
      %p134 = scmp.eq.s32.totalorder %s24, 0
      %p135 = por %p133, %p134
      %s137 = sadd.s32 %s136, 1
      %p140 = scmp.eq.s32.totalorder %s18, 1
      %p141 = scmp.ne.s32.totalorder %s136, %s138
      %p142 = scmp.eq.s32.totalorder %s18, 0
      %p143 = por %p141, %p142
      %p144 = scmp.ne.s32.totalorder %s136, %s138
      %p145 = scmp.eq.s32.totalorder %s23, 1
      %p146 = por %p144, %p145
      %p147 = scmp.ne.s32.totalorder %s138, %s139
      %p148 = scmp.eq.s32.totalorder %s23, 0
      %p149 = por %p147, %p148
      %p150 = scmp.ne.s32.totalorder %s138, %s139
      %p151 = scmp.eq.s32.totalorder %s24, 1
      %p152 = por %p150, %p151
      %p154 = scmp.ne.s32.totalorder %s139, %s153
      %p155 = scmp.eq.s32.totalorder %s24, 0
      %p156 = por %p154, %p155
      %s158 = sadd.s32 %s157, 1
      %p161 = scmp.eq.s32.totalorder %s18, 1
      %p162 = scmp.ne.s32.totalorder %s157, %s159
      %p163 = scmp.eq.s32.totalorder %s18, 0
      %p164 = por %p162, %p163
      %p165 = scmp.ne.s32.totalorder %s157, %s159
      %p166 = scmp.eq.s32.totalorder %s23, 1
      %p167 = por %p165, %p166
      %p168 = scmp.ne.s32.totalorder %s159, %s160
      %p169 = scmp.eq.s32.totalorder %s23, 0
      %p170 = por %p168, %p169
      %p171 = scmp.ne.s32.totalorder %s159, %s160
      %p172 = scmp.eq.s32.totalorder %s24, 1
      %p173 = por %p171, %p172
      %p175 = scmp.ne.s32.totalorder %s160, %s174
      %p176 = scmp.eq.s32.totalorder %s24, 0
      %p177 = por %p175, %p176
      %s179 = sadd.s32 %s178, 1
      %p182 = scmp.eq.s32.totalorder %s18, 1
      %p183 = scmp.ne.s32.totalorder %s178, %s180
      %p184 = scmp.eq.s32.totalorder %s18, 0
      %p185 = por %p183, %p184
      %p186 = scmp.ne.s32.totalorder %s178, %s180
      %p187 = scmp.eq.s32.totalorder %s23, 1
      %p188 = por %p186, %p187
      %p189 = scmp.ne.s32.totalorder %s180, %s181
      %p190 = scmp.eq.s32.totalorder %s23, 0
      %p191 = por %p189, %p190
      %p192 = scmp.ne.s32.totalorder %s180, %s181
      %p193 = scmp.eq.s32.totalorder %s24, 1
      %p194 = por %p192, %p193
      %p196 = scmp.ne.s32.totalorder %s181, %s195
      %p197 = scmp.eq.s32.totalorder %s24, 0
      %p198 = por %p196, %p197
      %s200 = sadd.s32 %s199, 1
      %p203 = scmp.eq.s32.totalorder %s18, 1
      %p204 = scmp.ne.s32.totalorder %s199, %s201
      %p205 = scmp.eq.s32.totalorder %s18, 0
      %p206 = por %p204, %p205
      %p207 = scmp.ne.s32.totalorder %s199, %s201
      %p208 = scmp.eq.s32.totalorder %s23, 1
      %p209 = por %p207, %p208
      %p210 = scmp.ne.s32.totalorder %s201, %s202
      %p211 = scmp.eq.s32.totalorder %s23, 0
      %p212 = por %p210, %p211
      %p213 = scmp.ne.s32.totalorder %s201, %s202
      %p214 = scmp.eq.s32.totalorder %s24, 1
      %p215 = por %p213, %p214
      %p217 = scmp.ne.s32.totalorder %s202, %s216
      %p218 = scmp.eq.s32.totalorder %s24, 0
      %p219 = por %p217, %p218
      %s220 = ssub.s32 %s18, %s25
      %p221 = scmp.eq.s32.totalorder %s220, 0
      %s223 = sadd.s32 %s222, 1
      %s224 = scalar_select %p221, %s222, %s223
      %p227 = pneg %p221
      %p228 = scmp.eq.s32.totalorder %s18, 1
      %p229 = por %p227, %p228
      %p230 = scmp.ne.s32.totalorder %s222, %s225
      %p231 = scmp.eq.s32.totalorder %s18, 0
      %p232 = por %p230, %p231
      %p233 = scmp.ne.s32.totalorder %s222, %s225
      %p234 = scmp.eq.s32.totalorder %s23, 1
      %p235 = por %p233, %p234
      %p236 = scmp.ne.s32.totalorder %s225, %s226
      %p237 = scmp.eq.s32.totalorder %s23, 0
      %p238 = por %p236, %p237
      %p239 = scmp.ne.s32.totalorder %s225, %s226
      %p240 = scmp.eq.s32.totalorder %s24, 1
      %p241 = por %p239, %p240
      %p243 = scmp.ne.s32.totalorder %s226, %s242
      %p244 = scmp.eq.s32.totalorder %s24, 0
      %p245 = por %p243, %p244
      %p246 = scmp.le.s32.totalorder 1, %s18
      %p247 = scmp.lt.s32.totalorder %s18, 3
      %p248 = pnand %p246, %p247
      %p249 = pneg %p248
      // Predicated region
      $region9: #{tpu_custom_call.1} parent=5 // pred_check
        _
      $region10: #{tpu_custom_call.1} parent=5 // pred_check_branch
        %251 = sbr.rel (%p248) target = $region12
      $region11: #{tpu_custom_call.1} parent=5 // pred_region
        %s252 = ssub.s32 %s18, 1
        // Predicated region
        $region13: #{tpu_custom_call.1} parent=11 // pred_check
          %p253 = pneg %p65
        $region14: #{tpu_custom_call.1} parent=11 // pred_check_branch
          %255 = sbr.rel (%p253) target = $region16
        $region15: #{tpu_custom_call.1} parent=11 // pred_region
          _
        $region16: #{tpu_custom_call.1} parent=11 // pred_fallthru
          _
        // Predicated region
        $region17: #{tpu_custom_call.1} parent=11 // pred_check
          %p256 = pneg %p86
        $region18: #{tpu_custom_call.1} parent=11 // pred_check_branch
          %258 = sbr.rel (%p256) target = $region20
        $region19: #{tpu_custom_call.1} parent=11 // pred_region
          _
        $region20: #{tpu_custom_call.1} parent=11 // pred_fallthru
          _
        // Predicated region
        $region21: #{tpu_custom_call.1} parent=11 // pred_check
          %p259 = pneg %p107
        $region22: #{tpu_custom_call.1} parent=11 // pred_check_branch
          %261 = sbr.rel (%p259) target = $region24
        $region23: #{tpu_custom_call.1} parent=11 // pred_region
          _
        $region24: #{tpu_custom_call.1} parent=11 // pred_fallthru
          _
        // Predicated region
        $region25: #{tpu_custom_call.1} parent=11 // pred_check
          %p262 = pneg %p128
        $region26: #{tpu_custom_call.1} parent=11 // pred_check_branch
          %264 = sbr.rel (%p262) target = $region28
        $region27: #{tpu_custom_call.1} parent=11 // pred_region
          _
        $region28: #{tpu_custom_call.1} parent=11 // pred_fallthru
          _
        // Predicated region
        $region29: #{tpu_custom_call.1} parent=11 // pred_check
          %p265 = pneg %p149
        $region30: #{tpu_custom_call.1} parent=11 // pred_check_branch
          %267 = sbr.rel (%p265) target = $region32
        $region31: #{tpu_custom_call.1} parent=11 // pred_region
          %s269 = ssub.s32 2048, 2048
          %270 = vsyncadd [#allocation4], %s269
          %s271 = sshll.u32 [#allocation3], 4
          %s272 = int_to_ptr.vmem [resolvable:$true] %s271
          %277 = dma.hbm_to_vmem [thread:$0]  %s5, 2048, %s272, [#allocation4], 128, 128, 8
        $region32: #{tpu_custom_call.1} parent=11 // pred_fallthru
          _
        // Predicated region
        $region33: #{tpu_custom_call.1} parent=11 // pred_check
          %p278 = pneg %p170
        $region34: #{tpu_custom_call.1} parent=11 // pred_check_branch
          %280 = sbr.rel (%p278) target = $region36
        $region35: #{tpu_custom_call.1} parent=11 // pred_region
          _
        $region36: #{tpu_custom_call.1} parent=11 // pred_fallthru
          _
        // Predicated region
        $region37: #{tpu_custom_call.1} parent=11 // pred_check
          %p281 = pneg %p191
        $region38: #{tpu_custom_call.1} parent=11 // pred_check_branch
          %283 = sbr.rel (%p281) target = $region40
        $region39: #{tpu_custom_call.1} parent=11 // pred_region
          _
        $region40: #{tpu_custom_call.1} parent=11 // pred_fallthru
          _
        // Predicated region
        $region41: #{tpu_custom_call.1} parent=11 // pred_check
          %p284 = pneg %p212
        $region42: #{tpu_custom_call.1} parent=11 // pred_check_branch
          %286 = sbr.rel (%p284) target = $region44
        $region43: #{tpu_custom_call.1} parent=11 // pred_region
          _
        $region44: #{tpu_custom_call.1} parent=11 // pred_fallthru
          _
      $region12: #{tpu_custom_call.1} parent=5 // pred_fallthru
        _
      %p287 = scmp.lt.s32.totalorder %s18, 2
      // Predicated region
      $region45: #{tpu_custom_call.1} parent=5 // pred_check
        %p288 = pneg %p287
      $region46: #{tpu_custom_call.1} parent=5 // pred_check_branch
        %290 = sbr.rel (%p288) target = $region48
      $region47: #{tpu_custom_call.1} parent=5 // pred_region
        // Predicated region
        $region49: #{tpu_custom_call.1} parent=47 // pred_check
          %p291 = pneg %p38
        $region50: #{tpu_custom_call.1} parent=47 // pred_check_branch
          %293 = sbr.rel (%p291) target = $region52
        $region51: #{tpu_custom_call.1} parent=47 // pred_region
          %s294 = smul.u32 16, %s18
          %p295 = scmp.lt.s32.totalorder %s294, 31
          %s296 = scalar_select %p295, %s294, 31
          %s297 = smul.addr %s296, 8
          %s298 = scalar_lea.vmem %s0, %s297
          %s299 = smul.u32 16, %s18
        $region52: #{tpu_custom_call.1} parent=47 // pred_fallthru
          _
      $region48: #{tpu_custom_call.1} parent=5 // pred_fallthru
        _
      %p300 = scmp.le.s32.totalorder 1, %s18
      %p301 = scmp.lt.s32.totalorder %s18, 3
      %p302 = pnand %p300, %p301
      %p303 = pneg %p302
      // Predicated region
      $region53: #{tpu_custom_call.1} parent=5 // pred_check
        _
      $region54: #{tpu_custom_call.1} parent=5 // pred_check_branch
        %305 = sbr.rel (%p302) target = $region56
      $region55: #{tpu_custom_call.1} parent=5 // pred_region
        %s306 = ssub.s32 %s18, 1
        // Predicated region
        $region57: #{tpu_custom_call.1} parent=55 // pred_check
          %p307 = pneg %p149
        $region58: #{tpu_custom_call.1} parent=55 // pred_check_branch
          %309 = sbr.rel (%p307) target = $region60
        $region59: #{tpu_custom_call.1} parent=55 // pred_region
          %310 = dma.done [#allocation4], 2048
        $region60: #{tpu_custom_call.1} parent=55 // pred_fallthru
          _
        %s311 = smul.u32 16, %s23
        %p312 = scmp.lt.s32.totalorder %s311, 31
        %s313 = scalar_select %p312, %s311, 31
        %s314 = smul.addr %s313, 8
        %s315 = scalar_lea.vmem %s0, %s314
        %p316 = pneg %p44
        %p317 = pneg %p41
        %p318 = pneg %p65
        %p319 = pneg %p62
        %p320 = pneg %p86
        %p321 = pneg %p83
        %p322 = pneg %p107
        %p323 = pneg %p104
        %p324 = pneg %p128
        %p325 = pneg %p125
        %p326 = pneg %p149
        %p327 = pneg %p146
        %p328 = pneg %p170
        %p329 = pneg %p167
        %p330 = pneg %p191
        %p331 = pneg %p188
        %p332 = pneg %p212
        %p333 = pneg %p209
        %p334 = pneg %p238
        %p335 = pneg %p235
        %s336 = smul.u32 16, %s23
        %p337 = scmp.lt.s32.totalorder %s336, 31
        %s338 = scalar_select %p337, %s336, 31
        %s339 = smul.addr %s338, 8
        %s340 = scalar_lea.vmem %s9, %s339
        %s341 = smul.u32 16, %s23
        %p342 = scmp.lt.s32.totalorder %s341, 31
        %s343 = scalar_select %p342, %s341, 31
        %s344 = smul.addr %s343, 8
        %s345 = scalar_lea.vmem %s0, %s344
        %s346 = smul.u32 16, %s23
        %s347 = smul.u32 16, %s23
        %p348 = scmp.lt.s32.totalorder %s347, 31
        %s349 = scalar_select %p348, %s347, 31
        %s350 = smul.addr %s349, 8
        %s351 = scalar_lea.vmem %s9, %s350
        %s352 = smul.u32 16, %s23
        %v353 = vld [vmem:[%s345] sm:$0xff]
        %v354 = vld [vmem:[%s345 + $0x8] sm:$0xff]
        %v355 = vld [vmem:[%s345 + $0x10] sm:$0xff]
        %v356 = vld [vmem:[%s345 + $0x18] sm:$0xff]
        %v357 = vld [vmem:[%s345 + $0x20] sm:$0xff]
        %v358 = vld [vmem:[%s345 + $0x28] sm:$0xff]
        %v359 = vld [vmem:[%s345 + $0x30] sm:$0xff]
        %v360 = vld [vmem:[%s345 + $0x38] sm:$0xff]
        %v361 = vld [vmem:[%s345 + $0x40] sm:$0xff]
        %v362 = vld [vmem:[%s345 + $0x48] sm:$0xff]
        %v363 = vld [vmem:[%s345 + $0x50] sm:$0xff]
        %v364 = vld [vmem:[%s345 + $0x58] sm:$0xff]
        %v365 = vld [vmem:[%s345 + $0x60] sm:$0xff]
        %v366 = vld [vmem:[%s345 + $0x68] sm:$0xff]
        %v367 = vld [vmem:[%s345 + $0x70] sm:$0xff]
        %v368 = vld [vmem:[%s345 + $0x78] sm:$0xff]
        %v369 = vld [vmem:[%s1] sm:$0xff]
        %v370 = vld [vmem:[%s1 + $0x8] sm:$0xff]
        %v371 = vld [vmem:[%s1 + $0x10] sm:$0xff]
        %v372 = vld [vmem:[%s1 + $0x18] sm:$0xff]
        %v373 = vld [vmem:[%s1 + $0x20] sm:$0xff]
        %v374 = vld [vmem:[%s1 + $0x28] sm:$0xff]
        %v375 = vld [vmem:[%s1 + $0x30] sm:$0xff]
        %v376 = vld [vmem:[%s1 + $0x38] sm:$0xff]
        %v377 = vld [vmem:[%s1 + $0x40] sm:$0xff]
        %v378 = vld [vmem:[%s1 + $0x48] sm:$0xff]
        %v379 = vld [vmem:[%s1 + $0x50] sm:$0xff]
        %v380 = vld [vmem:[%s1 + $0x58] sm:$0xff]
        %v381 = vld [vmem:[%s1 + $0x60] sm:$0xff]
        %v382 = vld [vmem:[%s1 + $0x68] sm:$0xff]
        %v383 = vld [vmem:[%s1 + $0x70] sm:$0xff]
        %v384 = vld [vmem:[%s1 + $0x78] sm:$0xff]
        %v385 = vld [vmem:[%s2] sm:$0x3]
        %v387 = vlaneseq
        %v388 = vshrl.u32 %v387, 7
        %v389 = vsub.s32 0, %v388
        %v390 = vrot.slane %v385, %v389
        %v391 = vlaneseq
        %v392 = vshrl.u32 %v391, 7
        %v393 = vsub.s32 1, %v392
        %v394 = vrot.slane %v385, %v393
        %vm397 = vcmask 523264
        %v399 = vsel %vm397, %v353, 0
        %v402 = vsel %vm397, %v354, 0
        %v405 = vsel %vm397, %v355, 0
        %v408 = vsel %vm397, %v356, 0
        %v411 = vsel %vm397, %v357, 0
        %v414 = vsel %vm397, %v358, 0
        %v417 = vsel %vm397, %v359, 0
        %v420 = vsel %vm397, %v360, 0
        %v423 = vsel %vm397, %v361, 0
        %v426 = vsel %vm397, %v362, 0
        %v429 = vsel %vm397, %v363, 0
        %v432 = vsel %vm397, %v364, 0
        %v435 = vsel %vm397, %v365, 0
        %v438 = vsel %vm397, %v366, 0
        %v441 = vsel %vm397, %v367, 0
        %v444 = vsel %vm397, %v368, 0
        %446 = vmatprep.subr.mxu0 %v370
        %447 = vmatpush1.msra.mxu0 %v369
        %448 = vmatprep.subr.mxu0 %v372
        %449 = vmatpush1.msra.mxu0 %v371
        %450 = vmatprep.subr.mxu0 %v374
        %451 = vmatpush1.msra.mxu0 %v373
        %452 = vmatprep.subr.mxu0 %v376
        %453 = vmatpush1.msra.mxu0 %v375
        %454 = vmatprep.subr.mxu0 %v378
        %455 = vmatpush1.msra.mxu0 %v377
        %456 = vmatprep.subr.mxu0 %v380
        %457 = vmatpush1.msra.mxu0 %v379
        %458 = vmatprep.subr.mxu0 %v382
        %459 = vmatpush1.msra.mxu0 %v381
        %460 = vmatprep.subr.mxu0 %v384
        %461 = vmatpush1.msra.mxu0 %v383
        %462 = vmatprep.subr.mxu0 0.0
        %463 = vmatpush1.msra.mxu0 0.0
        %464 = vmatprep.subr.mxu0 0.0
        %465 = vmatpush1.msra.mxu0 0.0
        %466 = vmatprep.subr.mxu0 0.0
        %467 = vmatpush1.msra.mxu0 0.0
        %468 = vmatprep.subr.mxu0 0.0
        %469 = vmatpush1.msra.mxu0 0.0
        %470 = vmatprep.subr.mxu0 0.0
        %471 = vmatpush1.msra.mxu0 0.0
        %472 = vmatprep.subr.mxu0 0.0
        %473 = vmatpush1.msra.mxu0 0.0
        %474 = vmatprep.subr.mxu0 0.0
        %475 = vmatpush1.msra.mxu0 0.0
        %476 = vmatprep.subr.mxu0 0.0
        %477 = vmatpush1.msra.mxu0 0.0
        %478 = vmatprep.subr.mxu0 0.0
        %479 = vmatpush1.msra.mxu0 0.0
        %480 = vmatprep.subr.mxu0 0.0
        %481 = vmatpush1.msra.mxu0 0.0
        %482 = vmatprep.subr.mxu0 0.0
        %483 = vmatpush1.msra.mxu0 0.0
        %484 = vmatprep.subr.mxu0 0.0
        %485 = vmatpush1.msra.mxu0 0.0
        %486 = vmatprep.subr.mxu0 0.0
        %487 = vmatpush1.msra.mxu0 0.0
        %488 = vmatprep.subr.mxu0 0.0
        %489 = vmatpush1.msra.mxu0 0.0
        %490 = vmatprep.subr.mxu0 0.0
        %491 = vmatpush1.msra.mxu0 0.0
        %492 = vmatprep.subr.mxu0 0.0
        %493 = vmatpush1.msra.mxu0 0.0
        %494 = vmatprep.subr.mxu0 0.0
        %495 = vmatpush1.msra.mxu0 0.0
        %496 = vmatprep.subr.mxu0 0.0
        %497 = vmatpush1.msra.mxu0 0.0
        %498 = vmatprep.subr.mxu0 0.0
        %499 = vmatpush1.msra.mxu0 0.0
        %500 = vmatprep.subr.mxu0 0.0
        %501 = vmatpush1.msra.mxu0 0.0
        %502 = vmatprep.subr.mxu0 0.0
        %503 = vmatpush1.msra.mxu0 0.0
        %504 = vmatprep.subr.mxu0 0.0
        %505 = vmatpush1.msra.mxu0 0.0
        %506 = vmatprep.subr.mxu0 0.0
        %507 = vmatpush1.msra.mxu0 0.0
        %508 = vmatprep.subr.mxu0 0.0
        %509 = vmatpush1.msra.mxu0 0.0
        %510 = vmatprep.mubr.f32.mxu0 0.0
        %511 = vmatmul.mubr.f32.gmra.mrb[0].mxu0 %v399
        %v512 = vpop.f32.mrb[0].mxu0
        %v513 = vadd.f32 %v390, %v512
        %v514 = vpop.f32.mrb[0].mxu0
        %v515 = vadd.f32 %v394, %v514
        %516 = vmatprep.mubr.f32.mxu0 0.0
        %517 = vmatmul.mubr.f32.gmra.mrb[0].mxu0 %v402
        %v518 = vpop.f32.mrb[0].mxu0
        %v519 = vadd.f32 %v390, %v518
        %v520 = vpop.f32.mrb[0].mxu0
        %v521 = vadd.f32 %v394, %v520
        %522 = vmatprep.mubr.f32.mxu0 0.0
        %523 = vmatmul.mubr.f32.gmra.mrb[0].mxu0 %v405
        %v524 = vpop.f32.mrb[0].mxu0
        %v525 = vadd.f32 %v390, %v524
        %v526 = vpop.f32.mrb[0].mxu0
        %v527 = vadd.f32 %v394, %v526
        %528 = vmatprep.mubr.f32.mxu0 0.0
        %529 = vmatmul.mubr.f32.gmra.mrb[0].mxu0 %v408
        %v530 = vpop.f32.mrb[0].mxu0
        %v531 = vadd.f32 %v390, %v530
        %v532 = vpop.f32.mrb[0].mxu0
        %v533 = vadd.f32 %v394, %v532
        %534 = vmatprep.mubr.f32.mxu0 0.0
        %535 = vmatmul.mubr.f32.gmra.mrb[0].mxu0 %v411
        %v536 = vpop.f32.mrb[0].mxu0
        %v537 = vadd.f32 %v390, %v536
        %v538 = vpop.f32.mrb[0].mxu0
        %v539 = vadd.f32 %v394, %v538
        %540 = vmatprep.mubr.f32.mxu0 0.0
        %541 = vmatmul.mubr.f32.gmra.mrb[0].mxu0 %v414
        %v542 = vpop.f32.mrb[0].mxu0
        %v543 = vadd.f32 %v390, %v542
        %v544 = vpop.f32.mrb[0].mxu0
        %v545 = vadd.f32 %v394, %v544
        %546 = vmatprep.mubr.f32.mxu0 0.0
        %547 = vmatmul.mubr.f32.gmra.mrb[0].mxu0 %v417
        %v548 = vpop.f32.mrb[0].mxu0
        %v549 = vadd.f32 %v390, %v548
        %v550 = vpop.f32.mrb[0].mxu0
        %v551 = vadd.f32 %v394, %v550
        %552 = vmatprep.mubr.f32.mxu0 0.0
        %553 = vmatmul.mubr.f32.gmra.mrb[0].mxu0 %v420
        %v554 = vpop.f32.mrb[0].mxu0
        %v555 = vadd.f32 %v390, %v554
        %v556 = vpop.f32.mrb[0].mxu0
        %v557 = vadd.f32 %v394, %v556
        %558 = vmatprep.mubr.f32.mxu0 0.0
        %559 = vmatmul.mubr.f32.gmra.mrb[0].mxu0 %v423
        %v560 = vpop.f32.mrb[0].mxu0
        %v561 = vadd.f32 %v390, %v560
        %v562 = vpop.f32.mrb[0].mxu0
        %v563 = vadd.f32 %v394, %v562
        %564 = vmatprep.mubr.f32.mxu0 0.0
        %565 = vmatmul.mubr.f32.gmra.mrb[0].mxu0 %v426
        %v566 = vpop.f32.mrb[0].mxu0
        %v567 = vadd.f32 %v390, %v566
        %v568 = vpop.f32.mrb[0].mxu0
        %v569 = vadd.f32 %v394, %v568
        %570 = vmatprep.mubr.f32.mxu0 0.0
        %571 = vmatmul.mubr.f32.gmra.mrb[0].mxu0 %v429
        %v572 = vpop.f32.mrb[0].mxu0
        %v573 = vadd.f32 %v390, %v572
        %v574 = vpop.f32.mrb[0].mxu0
        %v575 = vadd.f32 %v394, %v574
        %576 = vmatprep.mubr.f32.mxu0 0.0
        %577 = vmatmul.mubr.f32.gmra.mrb[0].mxu0 %v432
        %v578 = vpop.f32.mrb[0].mxu0
        %v579 = vadd.f32 %v390, %v578
        %v580 = vpop.f32.mrb[0].mxu0
        %v581 = vadd.f32 %v394, %v580
        %582 = vmatprep.mubr.f32.mxu0 0.0
        %583 = vmatmul.mubr.f32.gmra.mrb[0].mxu0 %v435
        %v584 = vpop.f32.mrb[0].mxu0
        %v585 = vadd.f32 %v390, %v584
        %v586 = vpop.f32.mrb[0].mxu0
        %v587 = vadd.f32 %v394, %v586
        %588 = vmatprep.mubr.f32.mxu0 0.0
        %589 = vmatmul.mubr.f32.gmra.mrb[0].mxu0 %v438
        %v590 = vpop.f32.mrb[0].mxu0
        %v591 = vadd.f32 %v390, %v590
        %v592 = vpop.f32.mrb[0].mxu0
        %v593 = vadd.f32 %v394, %v592
        %594 = vmatprep.mubr.f32.mxu0 0.0
        %595 = vmatmul.mubr.f32.gmra.mrb[0].mxu0 %v441
        %v596 = vpop.f32.mrb[0].mxu0
        %v597 = vadd.f32 %v390, %v596
        %v598 = vpop.f32.mrb[0].mxu0
        %v599 = vadd.f32 %v394, %v598
        %600 = vmatprep.mubr.f32.mxu0 0.0
        %601 = vmatmul.mubr.f32.gmra.mrb[0].mxu0 %v444
        %v602 = vpop.f32.mrb[0].mxu0
        %v603 = vadd.f32 %v390, %v602
        %v604 = vpop.f32.mrb[0].mxu0
        %v605 = vadd.f32 %v394, %v604
        %606 = vdwg.mxu0
        %v607 = vmax.f32 %v513, 0.0
        %v608 = vmax.f32 %v515, 0.0
        %v609 = vmax.f32 %v519, 0.0
        %v610 = vmax.f32 %v521, 0.0
        %v611 = vmax.f32 %v525, 0.0
        %v612 = vmax.f32 %v527, 0.0
        %v613 = vmax.f32 %v531, 0.0
        %v614 = vmax.f32 %v533, 0.0
        %v615 = vmax.f32 %v537, 0.0
        %v616 = vmax.f32 %v539, 0.0
        %v617 = vmax.f32 %v543, 0.0
        %v618 = vmax.f32 %v545, 0.0
        %v619 = vmax.f32 %v549, 0.0
        %v620 = vmax.f32 %v551, 0.0
        %v621 = vmax.f32 %v555, 0.0
        %v622 = vmax.f32 %v557, 0.0
        %v623 = vmax.f32 %v561, 0.0
        %v624 = vmax.f32 %v563, 0.0
        %v625 = vmax.f32 %v567, 0.0
        %v626 = vmax.f32 %v569, 0.0
        %v627 = vmax.f32 %v573, 0.0
        %v628 = vmax.f32 %v575, 0.0
        %v629 = vmax.f32 %v579, 0.0
        %v630 = vmax.f32 %v581, 0.0
        %v631 = vmax.f32 %v585, 0.0
        %v632 = vmax.f32 %v587, 0.0
        %v633 = vmax.f32 %v591, 0.0
        %v634 = vmax.f32 %v593, 0.0
        %v635 = vmax.f32 %v597, 0.0
        %v636 = vmax.f32 %v599, 0.0
        %v637 = vmax.f32 %v603, 0.0
        %v638 = vmax.f32 %v605, 0.0
        %v639 = vld [vmem:[%s3] sm:$0xff]
        %v640 = vld [vmem:[%s3 + $0x8] sm:$0xff]
        %v641 = vld [vmem:[%s3 + $0x10] sm:$0xff]
        %v642 = vld [vmem:[%s3 + $0x18] sm:$0xff]
        %v643 = vld [vmem:[%s3 + $0x20] sm:$0xff]
        %v644 = vld [vmem:[%s3 + $0x28] sm:$0xff]
        %v645 = vld [vmem:[%s3 + $0x30] sm:$0xff]
        %v646 = vld [vmem:[%s3 + $0x38] sm:$0xff]
        %v647 = vld [vmem:[%s3 + $0x40] sm:$0xff]
        %v648 = vld [vmem:[%s3 + $0x48] sm:$0xff]
        %v649 = vld [vmem:[%s3 + $0x50] sm:$0xff]
        %v650 = vld [vmem:[%s3 + $0x58] sm:$0xff]
        %v651 = vld [vmem:[%s3 + $0x60] sm:$0xff]
        %v652 = vld [vmem:[%s3 + $0x68] sm:$0xff]
        %v653 = vld [vmem:[%s3 + $0x70] sm:$0xff]
        %v654 = vld [vmem:[%s3 + $0x78] sm:$0xff]
        %v655 = vld [vmem:[%s3 + $0x80] sm:$0xff]
        %v656 = vld [vmem:[%s3 + $0x88] sm:$0xff]
        %v657 = vld [vmem:[%s3 + $0x90] sm:$0xff]
        %v658 = vld [vmem:[%s3 + $0x98] sm:$0xff]
        %v659 = vld [vmem:[%s3 + $0xa0] sm:$0xff]
        %v660 = vld [vmem:[%s3 + $0xa8] sm:$0xff]
        %v661 = vld [vmem:[%s3 + $0xb0] sm:$0xff]
        %v662 = vld [vmem:[%s3 + $0xb8] sm:$0xff]
        %v663 = vld [vmem:[%s3 + $0xc0] sm:$0xff]
        %v664 = vld [vmem:[%s3 + $0xc8] sm:$0xff]
        %v665 = vld [vmem:[%s3 + $0xd0] sm:$0xff]
        %v666 = vld [vmem:[%s3 + $0xd8] sm:$0xff]
        %v667 = vld [vmem:[%s3 + $0xe0] sm:$0xff]
        %v668 = vld [vmem:[%s3 + $0xe8] sm:$0xff]
        %v669 = vld [vmem:[%s3 + $0xf0] sm:$0xff]
        %v670 = vld [vmem:[%s3 + $0xf8] sm:$0xff]
        %v671 = vld [vmem:[%s4] sm:$0x1]
        %v673 = vlaneseq
        %v674 = vshrl.u32 %v673, 7
        %v675 = vsub.s32 0, %v674
        %v676 = vrot.slane %v671, %v675
        %678 = vmatprep.subr.mxu0 0.0
        %679 = vmatpush1.msra.mxu0 %v639
        %680 = vmatprep.subr.mxu0 0.0
        %681 = vmatpush1.msra.mxu0 %v640
        %682 = vmatprep.subr.mxu0 0.0
        %683 = vmatpush1.msra.mxu0 %v641
        %684 = vmatprep.subr.mxu0 0.0
        %685 = vmatpush1.msra.mxu0 %v642
        %686 = vmatprep.subr.mxu0 0.0
        %687 = vmatpush1.msra.mxu0 %v643
        %688 = vmatprep.subr.mxu0 0.0
        %689 = vmatpush1.msra.mxu0 %v644
        %690 = vmatprep.subr.mxu0 0.0
        %691 = vmatpush1.msra.mxu0 %v645
        %692 = vmatprep.subr.mxu0 0.0
        %693 = vmatpush1.msra.mxu0 %v646
        %694 = vmatprep.subr.mxu0 0.0
        %695 = vmatpush1.msra.mxu0 %v647
        %696 = vmatprep.subr.mxu0 0.0
        %697 = vmatpush1.msra.mxu0 %v648
        %698 = vmatprep.subr.mxu0 0.0
        %699 = vmatpush1.msra.mxu0 %v649
        %700 = vmatprep.subr.mxu0 0.0
        %701 = vmatpush1.msra.mxu0 %v650
        %702 = vmatprep.subr.mxu0 0.0
        %703 = vmatpush1.msra.mxu0 %v651
        %704 = vmatprep.subr.mxu0 0.0
        %705 = vmatpush1.msra.mxu0 %v652
        %706 = vmatprep.subr.mxu0 0.0
        %707 = vmatpush1.msra.mxu0 %v653
        %708 = vmatprep.subr.mxu0 0.0
        %709 = vmatpush1.msra.mxu0 %v654
        %710 = vmatprep.subr.mxu0 0.0
        %711 = vmatpush1.msra.mxu0 %v655
        %712 = vmatprep.subr.mxu0 0.0
        %713 = vmatpush1.msra.mxu0 %v656
        %714 = vmatprep.subr.mxu0 0.0
        %715 = vmatpush1.msra.mxu0 %v657
        %716 = vmatprep.subr.mxu0 0.0
        %717 = vmatpush1.msra.mxu0 %v658
        %718 = vmatprep.subr.mxu0 0.0
        %719 = vmatpush1.msra.mxu0 %v659
        %720 = vmatprep.subr.mxu0 0.0
        %721 = vmatpush1.msra.mxu0 %v660
        %722 = vmatprep.subr.mxu0 0.0
        %723 = vmatpush1.msra.mxu0 %v661
        %724 = vmatprep.subr.mxu0 0.0
        %725 = vmatpush1.msra.mxu0 %v662
        %726 = vmatprep.subr.mxu0 0.0
        %727 = vmatpush1.msra.mxu0 %v663
        %728 = vmatprep.subr.mxu0 0.0
        %729 = vmatpush1.msra.mxu0 %v664
        %730 = vmatprep.subr.mxu0 0.0
        %731 = vmatpush1.msra.mxu0 %v665
        %732 = vmatprep.subr.mxu0 0.0
        %733 = vmatpush1.msra.mxu0 %v666
        %734 = vmatprep.subr.mxu0 0.0
        %735 = vmatpush1.msra.mxu0 %v667
        %736 = vmatprep.subr.mxu0 0.0
        %737 = vmatpush1.msra.mxu0 %v668
        %738 = vmatprep.subr.mxu0 0.0
        %739 = vmatpush1.msra.mxu0 %v669
        %740 = vmatprep.subr.mxu0 0.0
        %741 = vmatpush1.msra.mxu0 %v670
        %742 = vmatprep.mubr.f32.mxu0 %v608
        %743 = vmatmul.mubr.f32.gmra.mrb[0].mxu0 %v607
        %v744 = vpop.f32.mrb[0].mxu0
        %v745 = vadd.f32 %v676, %v744
        %v746 = vpop.f32.mrb[0].mxu0
        %747 = vmatprep.mubr.f32.mxu0 %v610
        %748 = vmatmul.mubr.f32.gmra.mrb[0].mxu0 %v609
        %v749 = vpop.f32.mrb[0].mxu0
        %v750 = vadd.f32 %v676, %v749
        %v751 = vpop.f32.mrb[0].mxu0
        %752 = vmatprep.mubr.f32.mxu0 %v612
        %753 = vmatmul.mubr.f32.gmra.mrb[0].mxu0 %v611
        %v754 = vpop.f32.mrb[0].mxu0
        %v755 = vadd.f32 %v676, %v754
        %v756 = vpop.f32.mrb[0].mxu0
        %757 = vmatprep.mubr.f32.mxu0 %v614
        %758 = vmatmul.mubr.f32.gmra.mrb[0].mxu0 %v613
        %v759 = vpop.f32.mrb[0].mxu0
        %v760 = vadd.f32 %v676, %v759
        %v761 = vpop.f32.mrb[0].mxu0
        %762 = vmatprep.mubr.f32.mxu0 %v616
        %763 = vmatmul.mubr.f32.gmra.mrb[0].mxu0 %v615
        %v764 = vpop.f32.mrb[0].mxu0
        %v765 = vadd.f32 %v676, %v764
        %v766 = vpop.f32.mrb[0].mxu0
        %767 = vmatprep.mubr.f32.mxu0 %v618
        %768 = vmatmul.mubr.f32.gmra.mrb[0].mxu0 %v617
        %v769 = vpop.f32.mrb[0].mxu0
        %v770 = vadd.f32 %v676, %v769
        %v771 = vpop.f32.mrb[0].mxu0
        %772 = vmatprep.mubr.f32.mxu0 %v620
        %773 = vmatmul.mubr.f32.gmra.mrb[0].mxu0 %v619
        %v774 = vpop.f32.mrb[0].mxu0
        %v775 = vadd.f32 %v676, %v774
        %v776 = vpop.f32.mrb[0].mxu0
        %777 = vmatprep.mubr.f32.mxu0 %v622
        %778 = vmatmul.mubr.f32.gmra.mrb[0].mxu0 %v621
        %v779 = vpop.f32.mrb[0].mxu0
        %v780 = vadd.f32 %v676, %v779
        %v781 = vpop.f32.mrb[0].mxu0
        %782 = vmatprep.mubr.f32.mxu0 %v624
        %783 = vmatmul.mubr.f32.gmra.mrb[0].mxu0 %v623
        %v784 = vpop.f32.mrb[0].mxu0
        %v785 = vadd.f32 %v676, %v784
        %v786 = vpop.f32.mrb[0].mxu0
        %787 = vmatprep.mubr.f32.mxu0 %v626
        %788 = vmatmul.mubr.f32.gmra.mrb[0].mxu0 %v625
        %v789 = vpop.f32.mrb[0].mxu0
        %v790 = vadd.f32 %v676, %v789
        %v791 = vpop.f32.mrb[0].mxu0
        %792 = vmatprep.mubr.f32.mxu0 %v628
        %793 = vmatmul.mubr.f32.gmra.mrb[0].mxu0 %v627
        %v794 = vpop.f32.mrb[0].mxu0
        %v795 = vadd.f32 %v676, %v794
        %v796 = vpop.f32.mrb[0].mxu0
        %797 = vmatprep.mubr.f32.mxu0 %v630
        %798 = vmatmul.mubr.f32.gmra.mrb[0].mxu0 %v629
        %v799 = vpop.f32.mrb[0].mxu0
        %v800 = vadd.f32 %v676, %v799
        %v801 = vpop.f32.mrb[0].mxu0
        %802 = vmatprep.mubr.f32.mxu0 %v632
        %803 = vmatmul.mubr.f32.gmra.mrb[0].mxu0 %v631
        %v804 = vpop.f32.mrb[0].mxu0
        %v805 = vadd.f32 %v676, %v804
        %v806 = vpop.f32.mrb[0].mxu0
        %807 = vmatprep.mubr.f32.mxu0 %v634
        %808 = vmatmul.mubr.f32.gmra.mrb[0].mxu0 %v633
        %v809 = vpop.f32.mrb[0].mxu0
        %v810 = vadd.f32 %v676, %v809
        %v811 = vpop.f32.mrb[0].mxu0
        %812 = vmatprep.mubr.f32.mxu0 %v636
        %813 = vmatmul.mubr.f32.gmra.mrb[0].mxu0 %v635
        %v814 = vpop.f32.mrb[0].mxu0
        %v815 = vadd.f32 %v676, %v814
        %v816 = vpop.f32.mrb[0].mxu0
        %817 = vmatprep.mubr.f32.mxu0 %v638
        %818 = vmatmul.mubr.f32.gmra.mrb[0].mxu0 %v637
        %v819 = vpop.f32.mrb[0].mxu0
        %v820 = vadd.f32 %v676, %v819
        %v821 = vpop.f32.mrb[0].mxu0
        %822 = vdwg.mxu0
        %v823 = vmax.f32 %v745, 0.0
        %v824 = vmax.f32 %v750, 0.0
        %v825 = vmax.f32 %v755, 0.0
        %v826 = vmax.f32 %v760, 0.0
        %v827 = vmax.f32 %v765, 0.0
        %v828 = vmax.f32 %v770, 0.0
        %v829 = vmax.f32 %v775, 0.0
        %v830 = vmax.f32 %v780, 0.0
        %v831 = vmax.f32 %v785, 0.0
        %v832 = vmax.f32 %v790, 0.0
        %v833 = vmax.f32 %v795, 0.0
        %v834 = vmax.f32 %v800, 0.0
        %v835 = vmax.f32 %v805, 0.0
        %v836 = vmax.f32 %v810, 0.0
        %v837 = vmax.f32 %v815, 0.0
        %v838 = vmax.f32 %v820, 0.0
        %v839 = vld [vmem:[#allocation3] sm:$0xff]
        %v840 = vld [vmem:[#allocation3 + $0x8] sm:$0xff]
        %v841 = vld [vmem:[#allocation3 + $0x10] sm:$0xff]
        %v842 = vld [vmem:[#allocation3 + $0x18] sm:$0xff]
        %v843 = vld [vmem:[#allocation3 + $0x20] sm:$0xff]
        %v844 = vld [vmem:[#allocation3 + $0x28] sm:$0xff]
        %v845 = vld [vmem:[#allocation3 + $0x30] sm:$0xff]
        %v846 = vld [vmem:[#allocation3 + $0x38] sm:$0xff]
        %v847 = vld [vmem:[#allocation3 + $0x40] sm:$0xff]
        %v848 = vld [vmem:[#allocation3 + $0x48] sm:$0xff]
        %v849 = vld [vmem:[#allocation3 + $0x50] sm:$0xff]
        %v850 = vld [vmem:[#allocation3 + $0x58] sm:$0xff]
        %v851 = vld [vmem:[#allocation3 + $0x60] sm:$0xff]
        %v852 = vld [vmem:[#allocation3 + $0x68] sm:$0xff]
        %v853 = vld [vmem:[#allocation3 + $0x70] sm:$0xff]
        %v854 = vld [vmem:[#allocation3 + $0x78] sm:$0xff]
        %v855 = vld [vmem:[%s6] sm:$0x1]
        %v857 = vlaneseq
        %v858 = vshrl.u32 %v857, 7
        %v859 = vsub.s32 0, %v858
        %v860 = vrot.slane %v855, %v859
        %862 = vmatprep.subr.mxu0 0.0
        %863 = vmatpush1.msra.mxu0 %v839
        %864 = vmatprep.subr.mxu0 0.0
        %865 = vmatpush1.msra.mxu0 %v840
        %866 = vmatprep.subr.mxu0 0.0
        %867 = vmatpush1.msra.mxu0 %v841
        %868 = vmatprep.subr.mxu0 0.0
        %869 = vmatpush1.msra.mxu0 %v842
        %870 = vmatprep.subr.mxu0 0.0
        %871 = vmatpush1.msra.mxu0 %v843
        %872 = vmatprep.subr.mxu0 0.0
        %873 = vmatpush1.msra.mxu0 %v844
        %874 = vmatprep.subr.mxu0 0.0
        %875 = vmatpush1.msra.mxu0 %v845
        %876 = vmatprep.subr.mxu0 0.0
        %877 = vmatpush1.msra.mxu0 %v846
        %878 = vmatprep.subr.mxu0 0.0
        %879 = vmatpush1.msra.mxu0 %v847
        %880 = vmatprep.subr.mxu0 0.0
        %881 = vmatpush1.msra.mxu0 %v848
        %882 = vmatprep.subr.mxu0 0.0
        %883 = vmatpush1.msra.mxu0 %v849
        %884 = vmatprep.subr.mxu0 0.0
        %885 = vmatpush1.msra.mxu0 %v850
        %886 = vmatprep.subr.mxu0 0.0
        %887 = vmatpush1.msra.mxu0 %v851
        %888 = vmatprep.subr.mxu0 0.0
        %889 = vmatpush1.msra.mxu0 %v852
        %890 = vmatprep.subr.mxu0 0.0
        %891 = vmatpush1.msra.mxu0 %v853
        %892 = vmatprep.subr.mxu0 0.0
        %893 = vmatpush1.msra.mxu0 %v854
        %894 = vmatprep.subr.mxu0 0.0
        %895 = vmatpush1.msra.mxu0 0.0
        %896 = vmatprep.subr.mxu0 0.0
        %897 = vmatpush1.msra.mxu0 0.0
        %898 = vmatprep.subr.mxu0 0.0
        %899 = vmatpush1.msra.mxu0 0.0
        %900 = vmatprep.subr.mxu0 0.0
        %901 = vmatpush1.msra.mxu0 0.0
        %902 = vmatprep.subr.mxu0 0.0
        %903 = vmatpush1.msra.mxu0 0.0
        %904 = vmatprep.subr.mxu0 0.0
        %905 = vmatpush1.msra.mxu0 0.0
        %906 = vmatprep.subr.mxu0 0.0
        %907 = vmatpush1.msra.mxu0 0.0
        %908 = vmatprep.subr.mxu0 0.0
        %909 = vmatpush1.msra.mxu0 0.0
        %910 = vmatprep.subr.mxu0 0.0
        %911 = vmatpush1.msra.mxu0 0.0
        %912 = vmatprep.subr.mxu0 0.0
        %913 = vmatpush1.msra.mxu0 0.0
        %914 = vmatprep.subr.mxu0 0.0
        %915 = vmatpush1.msra.mxu0 0.0
        %916 = vmatprep.subr.mxu0 0.0
        %917 = vmatpush1.msra.mxu0 0.0
        %918 = vmatprep.subr.mxu0 0.0
        %919 = vmatpush1.msra.mxu0 0.0
        %920 = vmatprep.subr.mxu0 0.0
        %921 = vmatpush1.msra.mxu0 0.0
        %922 = vmatprep.subr.mxu0 0.0
        %923 = vmatpush1.msra.mxu0 0.0
        %924 = vmatprep.subr.mxu0 0.0
        %925 = vmatpush1.msra.mxu0 0.0
        %926 = vmatprep.mubr.f32.mxu0 0.0
        %927 = vmatmul.mubr.f32.gmra.mrb[0].mxu0 %v823
        %v928 = vpop.f32.mrb[0].mxu0
        %v929 = vadd.f32 %v860, %v928
        %v930 = vpop.f32.mrb[0].mxu0
        %931 = vmatprep.mubr.f32.mxu0 0.0
        %932 = vmatmul.mubr.f32.gmra.mrb[0].mxu0 %v824
        %v933 = vpop.f32.mrb[0].mxu0
        %v934 = vadd.f32 %v860, %v933
        %v935 = vpop.f32.mrb[0].mxu0
        %936 = vmatprep.mubr.f32.mxu0 0.0
        %937 = vmatmul.mubr.f32.gmra.mrb[0].mxu0 %v825
        %v938 = vpop.f32.mrb[0].mxu0
        %v939 = vadd.f32 %v860, %v938
        %v940 = vpop.f32.mrb[0].mxu0
        %941 = vmatprep.mubr.f32.mxu0 0.0
        %942 = vmatmul.mubr.f32.gmra.mrb[0].mxu0 %v826
        %v943 = vpop.f32.mrb[0].mxu0
        %v944 = vadd.f32 %v860, %v943
        %v945 = vpop.f32.mrb[0].mxu0
        %946 = vmatprep.mubr.f32.mxu0 0.0
        %947 = vmatmul.mubr.f32.gmra.mrb[0].mxu0 %v827
        %v948 = vpop.f32.mrb[0].mxu0
        %v949 = vadd.f32 %v860, %v948
        %v950 = vpop.f32.mrb[0].mxu0
        %951 = vmatprep.mubr.f32.mxu0 0.0
        %952 = vmatmul.mubr.f32.gmra.mrb[0].mxu0 %v828
        %v953 = vpop.f32.mrb[0].mxu0
        %v954 = vadd.f32 %v860, %v953
        %v955 = vpop.f32.mrb[0].mxu0
        %956 = vmatprep.mubr.f32.mxu0 0.0
        %957 = vmatmul.mubr.f32.gmra.mrb[0].mxu0 %v829
        %v958 = vpop.f32.mrb[0].mxu0
        %v959 = vadd.f32 %v860, %v958
        %v960 = vpop.f32.mrb[0].mxu0
        %961 = vmatprep.mubr.f32.mxu0 0.0
        %962 = vmatmul.mubr.f32.gmra.mrb[0].mxu0 %v830
        %v963 = vpop.f32.mrb[0].mxu0
        %v964 = vadd.f32 %v860, %v963
        %v965 = vpop.f32.mrb[0].mxu0
        %966 = vmatprep.mubr.f32.mxu0 0.0
        %967 = vmatmul.mubr.f32.gmra.mrb[0].mxu0 %v831
        %v968 = vpop.f32.mrb[0].mxu0
        %v969 = vadd.f32 %v860, %v968
        %v970 = vpop.f32.mrb[0].mxu0
        %971 = vmatprep.mubr.f32.mxu0 0.0
        %972 = vmatmul.mubr.f32.gmra.mrb[0].mxu0 %v832
        %v973 = vpop.f32.mrb[0].mxu0
        %v974 = vadd.f32 %v860, %v973
        %v975 = vpop.f32.mrb[0].mxu0
        %976 = vmatprep.mubr.f32.mxu0 0.0
        %977 = vmatmul.mubr.f32.gmra.mrb[0].mxu0 %v833
        %v978 = vpop.f32.mrb[0].mxu0
        %v979 = vadd.f32 %v860, %v978
        %v980 = vpop.f32.mrb[0].mxu0
        %981 = vmatprep.mubr.f32.mxu0 0.0
        %982 = vmatmul.mubr.f32.gmra.mrb[0].mxu0 %v834
        %v983 = vpop.f32.mrb[0].mxu0
        %v984 = vadd.f32 %v860, %v983
        %v985 = vpop.f32.mrb[0].mxu0
        %986 = vmatprep.mubr.f32.mxu0 0.0
        %987 = vmatmul.mubr.f32.gmra.mrb[0].mxu0 %v835
        %v988 = vpop.f32.mrb[0].mxu0
        %v989 = vadd.f32 %v860, %v988
        %v990 = vpop.f32.mrb[0].mxu0
        %991 = vmatprep.mubr.f32.mxu0 0.0
        %992 = vmatmul.mubr.f32.gmra.mrb[0].mxu0 %v836
        %v993 = vpop.f32.mrb[0].mxu0
        %v994 = vadd.f32 %v860, %v993
        %v995 = vpop.f32.mrb[0].mxu0
        %996 = vmatprep.mubr.f32.mxu0 0.0
        %997 = vmatmul.mubr.f32.gmra.mrb[0].mxu0 %v837
        %v998 = vpop.f32.mrb[0].mxu0
        %v999 = vadd.f32 %v860, %v998
        %v1000 = vpop.f32.mrb[0].mxu0
        %1001 = vmatprep.mubr.f32.mxu0 0.0
        %1002 = vmatmul.mubr.f32.gmra.mrb[0].mxu0 %v838
        %v1003 = vpop.f32.mrb[0].mxu0
        %v1004 = vadd.f32 %v860, %v1003
        %v1005 = vpop.f32.mrb[0].mxu0
        %1006 = vdwg.mxu0
        %v1007 = vmax.f32 %v929, 0.0
        %v1008 = vmax.f32 %v934, 0.0
        %v1009 = vmax.f32 %v939, 0.0
        %v1010 = vmax.f32 %v944, 0.0
        %v1011 = vmax.f32 %v949, 0.0
        %v1012 = vmax.f32 %v954, 0.0
        %v1013 = vmax.f32 %v959, 0.0
        %v1014 = vmax.f32 %v964, 0.0
        %v1015 = vmax.f32 %v969, 0.0
        %v1016 = vmax.f32 %v974, 0.0
        %v1017 = vmax.f32 %v979, 0.0
        %v1018 = vmax.f32 %v984, 0.0
        %v1019 = vmax.f32 %v989, 0.0
        %v1020 = vmax.f32 %v994, 0.0
        %v1021 = vmax.f32 %v999, 0.0
        %v1022 = vmax.f32 %v1004, 0.0
        %v1023 = vld [vmem:[%s7] sm:$0x1]
        %v1025 = vlaneseq
        %v1026 = vshrl.u32 %v1025, 7
        %v1027 = vsub.s32 0, %v1026
        %v1028 = vrot.slane %v1023, %v1027
        %v1030 = vmul.f32 %v1007, %v1028
        %v1031 = vmul.f32 %v1008, %v1028
        %v1032 = vmul.f32 %v1009, %v1028
        %v1033 = vmul.f32 %v1010, %v1028
        %v1034 = vmul.f32 %v1011, %v1028
        %v1035 = vmul.f32 %v1012, %v1028
        %v1036 = vmul.f32 %v1013, %v1028
        %v1037 = vmul.f32 %v1014, %v1028
        %v1038 = vmul.f32 %v1015, %v1028
        %v1039 = vmul.f32 %v1016, %v1028
        %v1040 = vmul.f32 %v1017, %v1028
        %v1041 = vmul.f32 %v1018, %v1028
        %v1042 = vmul.f32 %v1019, %v1028
        %v1043 = vmul.f32 %v1020, %v1028
        %v1044 = vmul.f32 %v1021, %v1028
        %v1045 = vmul.f32 %v1022, %v1028
        %1046 = vadd.xlane.f32.xlu0 %v1030
        %v1047 = vpop.xlane.xlu0 %1046
        %1048 = vadd.xlane.f32.xlu0 %v1031
        %v1049 = vpop.xlane.xlu0 %1048
        %1050 = vadd.xlane.f32.xlu0 %v1032
        %v1051 = vpop.xlane.xlu0 %1050
        %1052 = vadd.xlane.f32.xlu0 %v1033
        %v1053 = vpop.xlane.xlu0 %1052
        %1054 = vadd.xlane.f32.xlu0 %v1034
        %v1055 = vpop.xlane.xlu0 %1054
        %1056 = vadd.xlane.f32.xlu0 %v1035
        %v1057 = vpop.xlane.xlu0 %1056
        %1058 = vadd.xlane.f32.xlu0 %v1036
        %v1059 = vpop.xlane.xlu0 %1058
        %1060 = vadd.xlane.f32.xlu0 %v1037
        %v1061 = vpop.xlane.xlu0 %1060
        %1062 = vadd.xlane.f32.xlu0 %v1038
        %v1063 = vpop.xlane.xlu0 %1062
        %1064 = vadd.xlane.f32.xlu0 %v1039
        %v1065 = vpop.xlane.xlu0 %1064
        %1066 = vadd.xlane.f32.xlu0 %v1040
        %v1067 = vpop.xlane.xlu0 %1066
        %1068 = vadd.xlane.f32.xlu0 %v1041
        %v1069 = vpop.xlane.xlu0 %1068
        %1070 = vadd.xlane.f32.xlu0 %v1042
        %v1071 = vpop.xlane.xlu0 %1070
        %1072 = vadd.xlane.f32.xlu0 %v1043
        %v1073 = vpop.xlane.xlu0 %1072
        %1074 = vadd.xlane.f32.xlu0 %v1044
        %v1075 = vpop.xlane.xlu0 %1074
        %1076 = vadd.xlane.f32.xlu0 %v1045
        %v1077 = vpop.xlane.xlu0 %1076
        %v1078 = vld [vmem:[#allocation2] sm:$0x1]
        %v1080 = vlaneseq
        %v1081 = vshrl.u32 %v1080, 7
        %v1082 = vsub.s32 0, %v1081
        %v1083 = vrot.slane %v1078, %v1082
        %v1085 = vadd.f32 %v1047, %v1083
        %v1086 = vadd.f32 %v1049, %v1083
        %v1087 = vadd.f32 %v1051, %v1083
        %v1088 = vadd.f32 %v1053, %v1083
        %v1089 = vadd.f32 %v1055, %v1083
        %v1090 = vadd.f32 %v1057, %v1083
        %v1091 = vadd.f32 %v1059, %v1083
        %v1092 = vadd.f32 %v1061, %v1083
        %v1093 = vadd.f32 %v1063, %v1083
        %v1094 = vadd.f32 %v1065, %v1083
        %v1095 = vadd.f32 %v1067, %v1083
        %v1096 = vadd.f32 %v1069, %v1083
        %v1097 = vadd.f32 %v1071, %v1083
        %v1098 = vadd.f32 %v1073, %v1083
        %v1099 = vadd.f32 %v1075, %v1083
        %v1100 = vadd.f32 %v1077, %v1083
        %vm1101 = vcmask 7168
        %1102 = vst.msk [vmem:[%s351] sm:$0xff] %vm1101, %v1085
        %1103 = vst.msk [vmem:[%s351 + $0x8] sm:$0xff] %vm1101, %v1086
        %1104 = vst.msk [vmem:[%s351 + $0x10] sm:$0xff] %vm1101, %v1087
        %1105 = vst.msk [vmem:[%s351 + $0x18] sm:$0xff] %vm1101, %v1088
        %1106 = vst.msk [vmem:[%s351 + $0x20] sm:$0xff] %vm1101, %v1089
        %1107 = vst.msk [vmem:[%s351 + $0x28] sm:$0xff] %vm1101, %v1090
        %1108 = vst.msk [vmem:[%s351 + $0x30] sm:$0xff] %vm1101, %v1091
        %1109 = vst.msk [vmem:[%s351 + $0x38] sm:$0xff] %vm1101, %v1092
        %1110 = vst.msk [vmem:[%s351 + $0x40] sm:$0xff] %vm1101, %v1093
        %1111 = vst.msk [vmem:[%s351 + $0x48] sm:$0xff] %vm1101, %v1094
        %1112 = vst.msk [vmem:[%s351 + $0x50] sm:$0xff] %vm1101, %v1095
        %1113 = vst.msk [vmem:[%s351 + $0x58] sm:$0xff] %vm1101, %v1096
        %1114 = vst.msk [vmem:[%s351 + $0x60] sm:$0xff] %vm1101, %v1097
        %1115 = vst.msk [vmem:[%s351 + $0x68] sm:$0xff] %vm1101, %v1098
        %1116 = vst.msk [vmem:[%s351 + $0x70] sm:$0xff] %vm1101, %v1099
        %1117 = vst.msk [vmem:[%s351 + $0x78] sm:$0xff] %vm1101, %v1100
        %s1118 = smul.u32 16, %s23
        %p1119 = scmp.lt.s32.totalorder %s1118, 31
        %s1120 = scalar_select %p1119, %s1118, 31
        %s1121 = smul.addr %s1120, 8
        %s1122 = scalar_lea.vmem %s9, %s1121
        // Predicated region
        $region61: #{tpu_custom_call.1} parent=55 // pred_check
          %p1123 = pneg %p235
        $region62: #{tpu_custom_call.1} parent=55 // pred_check_branch
          %1125 = sbr.rel (%p1123) target = $region64
        $region63: #{tpu_custom_call.1} parent=55 // pred_region
          %s1126 = smul.u32 16, %s23
        $region64: #{tpu_custom_call.1} parent=55 // pred_fallthru
          _
      $region56: #{tpu_custom_call.1} parent=5 // pred_fallthru
        _
      %p1127 = scmp.le.s32.totalorder 2, %s18
      // Predicated region
      $region65: #{tpu_custom_call.1} parent=5 // pred_check
        %p1128 = pneg %p1127
      $region66: #{tpu_custom_call.1} parent=5 // pred_check_branch
        %1130 = sbr.rel (%p1128) target = $region68
      $region67: #{tpu_custom_call.1} parent=5 // pred_region
        %s1131 = ssub.s32 %s18, 2
        // Predicated region
        $region69: #{tpu_custom_call.1} parent=67 // pred_check
          %p1132 = pneg %p241
        $region70: #{tpu_custom_call.1} parent=67 // pred_check_branch
          %1134 = sbr.rel (%p1132) target = $region72
        $region71: #{tpu_custom_call.1} parent=67 // pred_region
          %s1135 = smul.u32 16, %s24
          %p1136 = scmp.lt.s32.totalorder %s1135, 31
          %s1137 = scalar_select %p1136, %s1135, 31
          %s1138 = smul.addr %s1137, 8
          %s1139 = scalar_lea.vmem %s9, %s1138
        $region72: #{tpu_custom_call.1} parent=67 // pred_fallthru
          _
      $region68: #{tpu_custom_call.1} parent=5 // pred_fallthru
        _
    $region6: #{tpu_custom_call.1} parent=1 // loop_footer
      %s22 = sadd.s32 1, %s18
    $region7: #{tpu_custom_call.1} parent=1 // loop_footer_branch
      %17 = sbr.rel target = $region3
    $region8: #{tpu_custom_call.1} parent=1 // loop_exit
      _
    %1140 = vsyncpa [#allocation4], 1
    %s1141 = scalar_lea.sflag [#allocation4], 1
    %1142 = vsyncpa %s1141, 1

</llo_original>
